<compile_context>
chip_gen: v5e
topology: v5e:2x2
jax: 0.10.0
libtpu: 0.0.40
codegen_flags: <defaults>
</compile_context>

<pallas_src>
import math

import jax
import jax.numpy as jnp
import numpy as np
from jax import lax
from jax.experimental import pallas as pl
from jax.experimental.pallas import tpu as pltpu

NEG_MASK_VALUE = -100000000.0  # same fill value PyTorch merge_mask uses for bool masks


def _make_mqa_kernel(nhead, head_dim, has_kpad, has_amask, return_attn):
    embed = nhead * head_dim

    def kernel(*refs):
        it = iter(refs)
        q_ref = next(it)                               # (tq, E)       bf16
        k_ref = next(it)                               # (tk, hd)      bf16 (pre-projected, shared)
        v_ref = next(it)                               # (tk, hd)      bf16 (pre-projected, shared)
        kpad_ref = next(it) if has_kpad else None      # (1, tk)       f32 additive
        amask_ref = next(it) if has_amask else None    # (nm, tq, tk)  f32 additive
        wq_ref = next(it)                              # (E, E)        bf16 (scale folded in)
        bq_ref = next(it)                              # (1, E)        f32  (scale folded in)
        wo_ref = next(it)                              # (E, E)        bf16
        bo_ref = next(it)                              # (1, E)        f32
        o_ref = next(it)                               # (tq, E)       f32
        attn_ref = next(it) if return_attn else None   # (h, tq, Lk)   bf16
        q_sc = next(it)                                # (h*tq, hd)    bf16 scratch
        m_sc = next(it)                                # (h, tq, 1)    f32  scratch
        l_sc = next(it)                                # (h, tq, 1)    f32  scratch
        acc_sc = next(it)                              # (h, tq, hd)   f32  scratch

        tq = q_ref.shape[0]
        tk = k_ref.shape[0]
        ki = pl.program_id(2)
        nk = pl.num_programs(2)

        # TODO(synk): attention dropout (F.dropout) not implemented; only dropout_p == 0.

        # ---- once per (batch, q-tile): fused E-wide Q projection + softmax-state init
        @pl.when(ki == 0)
        def _():
            q2d = jnp.dot(q_ref[...], wq_ref[...],
                          preferred_element_type=jnp.float32) + bq_ref[...]      # (tq, E)
            # head-major rows via nhead static column-slice copies (pure data movement,
            # done once per q-tile; no per-head matmuls, no broadcast over heads).
            for h in range(nhead):
                q_sc[h * tq:(h + 1) * tq, :] = (
                    q2d[:, h * head_dim:(h + 1) * head_dim].astype(jnp.bfloat16))
            m_sc[...] = jnp.full(m_sc.shape, -jnp.inf, jnp.float32)
            l_sc[...] = jnp.zeros(l_sc.shape, jnp.float32)
            acc_sc[...] = jnp.zeros(acc_sc.shape, jnp.float32)

        # ---- scores vs the single shared K tile: one 2-D NT matmul, M = nhead*tq ----
        s2 = lax.dot_general(q_sc[...], k_ref[...],
                             dimension_numbers=(((1,), (1,)), ((), ())),
                             preferred_element_type=jnp.float32)                 # (h*tq, tk)
        s3 = s2.reshape(nhead, tq, tk)
        if has_amask:
            s3 = s3 + amask_ref[...]        # (nm, tq, tk): broadcasts over heads if nm==1
        if has_kpad:
            s3 = s3 + kpad_ref[...][None]   # (1, 1, tk)

        # ---- online softmax (f32) ----
        m_prev = m_sc[...]
        m_new = jnp.maximum(m_prev, jnp.max(s3, axis=-1, keepdims=True))
        alpha = jnp.exp(m_prev - m_new)
        p = jnp.exp(s3 - m_new)                                                  # (h, tq, tk)
        l_sc[...] = alpha * l_sc[...] + jnp.sum(p, axis=-1, keepdims=True)
        pv = jnp.dot(p.reshape(nhead * tq, tk).astype(jnp.bfloat16), v_ref[...],
                     preferred_element_type=jnp.float32)                         # (h*tq, hd)
        acc_sc[...] = alpha * acc_sc[...] + pv.reshape(nhead, tq, head_dim)
        m_sc[...] = m_new

        # ---- finalize: normalize + fused E-wide output projection ----
        @pl.when(ki == nk - 1)
        def _():
            inv_l = pl.reciprocal(l_sc[...], approx=True)                        # (h, tq, 1)
            ctx = jnp.concatenate(
                [(acc_sc[h] * inv_l[h]).astype(jnp.bfloat16) for h in range(nhead)],
                axis=-1)                                                         # (tq, E)
            o = jnp.dot(ctx, wo_ref[...],
                        preferred_element_type=jnp.float32) + bo_ref[...]
            o_ref[...] = o.astype(o_ref.dtype)
            if return_attn:
                # Only valid with a single K/V tile (enforced by the wrapper).
                attn_ref[...] = (p * inv_l).astype(attn_ref.dtype)

    return kernel


def multi_query_attention(query, key, value, params, *, nhead,
                          attention_mask=None, key_padding_mask=None,
                          return_attention=False, block_q=128, block_k=512,
                          vmem_limit_bytes=None):
    """Forward pass matching the PyTorch MultiQueryAttention (dropout_p = 0)."""
    bs, lq, embed = query.shape
    lk = key.shape[1]
    head_dim = embed // nhead
    scale = 1.0 / math.sqrt(head_dim)

    # ---- host-side prep ----------------------------------------------------------
    q_bf = query.astype(jnp.bfloat16)

    # MQA's shared K/V projections are tiny (E x hd): do them once per batch here so
    # the kernel streams (tk, hd) tiles (nhead-fold less HBM traffic, no recompute).
    kproj = (key @ params["w_k"]["w"].T + params["w_k"]["b"]).astype(jnp.bfloat16)
    vproj = (value @ params["w_v"]["w"].T + params["w_v"]["b"]).astype(jnp.bfloat16)

    # Weights pre-transposed to (in, out); 1/sqrt(head_dim) folded into Wq / bq.
    wq = (params["w_q"]["w"].T * scale).astype(jnp.bfloat16)                     # (E, E)
    bq = (params["w_q"]["b"] * scale).reshape(1, embed).astype(jnp.float32)
    wo = params["w_o"]["w"].T.astype(jnp.bfloat16)                               # (E, E)
    bo = params["w_o"]["b"].reshape(1, embed).astype(jnp.float32)

    # ---- tiling --------------------------------------------------------------------
    bq_blk = block_q if (lq > block_q and lq % block_q == 0) else lq
    if return_attention:
        bk_blk = lk          # attention-weights output needs the full Lk row per step
    else:
        bk_blk = block_k if (lk > block_k and lk % block_k == 0) else lk
    n_q = pl.cdiv(lq, bq_blk)
    n_k = pl.cdiv(lk, bk_blk)

    # ---- masks (streamed small; never batch/head-broadcast in HBM) ------------------
    has_kpad = key_padding_mask is not None
    has_amask = attention_mask is not None
    extra_inputs, extra_specs = [], []
    if has_kpad:
        kp = key_padding_mask
        if kp.dtype == jnp.bool_:
            kp = jnp.where(kp, jnp.float32(NEG_MASK_VALUE), jnp.float32(0.0))
        kp = kp.astype(jnp.float32).reshape(bs, 1, lk)
        extra_inputs.append(kp)
        extra_specs.append(
            pl.BlockSpec((None, 1, bk_blk), lambda b, qi, ki: (b, 0, ki)))
    if has_amask:
        am = attention_mask
        if am.ndim == 2:                     # (Lq, Lk)
            am = am[None, None]
        elif am.ndim == 3:                   # (nm, Lq, Lk)
            am = am[None]
        assert am.ndim == 4 and am.shape[-2:] == (lq, lk)
        if am.dtype == jnp.bool_:
            am = jnp.where(am, jnp.float32(NEG_MASK_VALUE), jnp.float32(0.0))
        am = am.astype(jnp.float32)
        bm, nm = am.shape[0], am.shape[1]
        assert bm in (1, bs) and nm in (1, nhead)
        extra_inputs.append(am)
        if bm == 1:
            amask_spec = pl.BlockSpec((None, nm, bq_blk, bk_blk),
                                      lambda b, qi, ki: (0, 0, qi, ki))
        else:
            amask_spec = pl.BlockSpec((None, nm, bq_blk, bk_blk),
                                      lambda b, qi, ki: (b, 0, qi, ki))
        extra_specs.append(amask_spec)

    def _const_spec(shape):
        # Index-constant weight blocks. For very large E, consider
        # pipeline_mode=pl.Buffered(1) or memory_space=pl.ANY to avoid double-buffering.
        return pl.BlockSpec(shape, lambda b, qi, ki: (0,) * len(shape))

    in_specs = [
        pl.BlockSpec((None, bq_blk, embed), lambda b, qi, ki: (b, qi, 0)),       # query
        pl.BlockSpec((None, bk_blk, head_dim), lambda b, qi, ki: (b, ki, 0)),    # K (proj)
        pl.BlockSpec((None, bk_blk, head_dim), lambda b, qi, ki: (b, ki, 0)),    # V (proj)
        *extra_specs,
        _const_spec((embed, embed)),     # wq (scale folded)
        _const_spec((1, embed)),         # bq (scale folded)
        _const_spec((embed, embed)),     # wo
        _const_spec((1, embed)),         # bo
    ]

    out_shapes = [jax.ShapeDtypeStruct((bs, lq, embed), jnp.float32)]
    out_specs = [pl.BlockSpec((None, bq_blk, embed), lambda b, qi, ki: (b, qi, 0))]
    if return_attention:
        # bf16 writeback halves the quadratic attention-weights HBM traffic.
        out_shapes.append(jax.ShapeDtypeStruct((bs, nhead, lq, lk), jnp.bfloat16))
        out_specs.append(pl.BlockSpec((None, nhead, bq_blk, lk),
                                      lambda b, qi, ki: (b, 0, qi, 0)))

    kernel = _make_mqa_kernel(nhead, head_dim, has_kpad, has_amask, return_attention)

    grid_spec = pltpu.PrefetchScalarGridSpec(
        num_scalar_prefetch=0,
        grid=(bs, n_q, n_k),
        in_specs=in_specs,
        out_specs=tuple(out_specs),
        scratch_shapes=[
            pltpu.VMEM((nhead * bq_blk, head_dim), jnp.bfloat16),   # per-head Q rows
            pltpu.VMEM((nhead, bq_blk, 1), jnp.float32),            # running max m
            pltpu.VMEM((nhead, bq_blk, 1), jnp.float32),            # running denom l
            pltpu.VMEM((nhead, bq_blk, head_dim), jnp.float32),     # running numerator
        ],
    )

    outs = pl.pallas_call(
        kernel,
        out_shape=tuple(out_shapes),
        grid_spec=grid_spec,
        compiler_params=pltpu.CompilerParams(
            dimension_semantics=("parallel", "parallel", "arbitrary"),
            vmem_limit_bytes=vmem_limit_bytes),
    )(q_bf, kproj, vproj, *extra_inputs, wq, bq, wo, bo)

    if return_attention:
        return outs[0], outs[1]
    return outs[0], None


def _reference(query, key, value, params, nhead, mask=None):
    """Pure-JAX f32 reference mirroring the PyTorch module (dropout_p = 0)."""
    bs, lq, embed = query.shape
    hd = embed // nhead
    Q = query @ params["w_q"]["w"].T + params["w_q"]["b"]
    K = key @ params["w_k"]["w"].T + params["w_k"]["b"]        # (bs, Lk, hd) shared
    V = value @ params["w_v"]["w"].T + params["w_v"]["b"]
    Q = Q.reshape(bs, lq, nhead, hd).transpose(0, 2, 1, 3)     # (bs, nh, Lq, hd)
    score = jnp.einsum("bhqd,bkd->bhqk", Q, K) / math.sqrt(hd)
    if mask is not None:
        score = score + mask
    attn = jax.nn.softmax(score, axis=-1)
    ctx = jnp.einsum("bhqk,bkd->bhqd", attn, V)
    ctx = ctx.transpose(0, 2, 1, 3).reshape(bs, lq, embed)
    x = ctx @ params["w_o"]["w"].T + params["w_o"]["b"]
    return x, attn


def init_params(key, embed_size, nhead):
    head_dim = embed_size // nhead
    ks = jax.random.split(key, 8)

    def lin(kw, kb, out_dim, in_dim):
        bound = 1.0 / math.sqrt(in_dim)
        return {
            "w": jax.random.uniform(kw, (out_dim, in_dim), jnp.float32, -bound, bound),
            "b": jax.random.uniform(kb, (out_dim,), jnp.float32, -bound, bound),
        }

    return {
        "w_q": lin(ks[0], ks[1], embed_size, embed_size),
        "w_k": lin(ks[2], ks[3], head_dim, embed_size),
        "w_v": lin(ks[4], ks[5], head_dim, embed_size),
        "w_o": lin(ks[6], ks[7], embed_size, embed_size),
    }


if __name__ == "__main__":
    embed_size, nhead = 32, 4
    bs, seq = 2, 8

    root = jax.random.PRNGKey(0)
    kp_, kq_, kk_, kv_, kk2_, kv2_ = jax.random.split(root, 6)
    params = init_params(kp_, embed_size, nhead)

    query = jax.random.normal(kq_, (bs, seq, embed_size), jnp.float32)
    key = jax.random.normal(kk_, (bs, seq, embed_size), jnp.float32)
    value = jax.random.normal(kv_, (bs, seq, embed_size), jnp.float32)

    # ---- 1) no mask, attention weights requested (single K/V tile) ---------------
    x, attn = multi_query_attention(query, key, value, params, nhead=nhead,
                                    return_attention=True)
    jax.block_until_ready((x, attn))
    x_ref, attn_ref = _reference(query, key, value, params, nhead, None)
    assert np.allclose(np.asarray(x), np.asarray(x_ref), atol=2e-2, rtol=2e-2)
    assert np.allclose(np.asarray(attn.astype(jnp.float32)), np.asarray(attn_ref),
                       atol=2e-2, rtol=2e-2)

    # ---- 2) boolean key-padding mask ---------------------------------------------
    kpad = jnp.zeros((bs, seq), jnp.bool_).at[:, -2:].set(True)
    x2, attn2 = multi_query_attention(query, key, value, params, nhead=nhead,
                                      key_padding_mask=kpad, return_attention=True)
    jax.block_until_ready((x2, attn2))
    kpad_add = jnp.where(kpad, jnp.float32(NEG_MASK_VALUE), 0.0).reshape(bs, 1, 1, seq)
    x2_ref, attn2_ref = _reference(query, key, value, params, nhead, kpad_add)
    assert np.allclose(np.asarray(x2), np.asarray(x2_ref), atol=2e-2, rtol=2e-2)
    assert np.allclose(np.asarray(attn2.astype(jnp.float32)), np.asarray(attn2_ref),
                       atol=2e-2, rtol=2e-2)

    # ---- 3) cross-attention with longer keys: bool attention mask + key padding,
    #         KV-tiled online-softmax path (block_k < Lk), no attention output ------
    seq_k = 256
    key3 = jax.random.normal(kk2_, (bs, seq_k, embed_size), jnp.float32)
    value3 = jax.random.normal(kv2_, (bs, seq_k, embed_size), jnp.float32)
    amask3 = jnp.broadcast_to((jnp.arange(seq_k) % 7 == 0).reshape(1, 1, 1, seq_k),
                              (1, 1, seq, seq_k))
    kpad3 = jnp.zeros((bs, seq_k), jnp.bool_).at[:, -32:].set(True)
    x3, attn3 = multi_query_attention(query, key3, value3, params, nhead=nhead,
                                      attention_mask=amask3, key_padding_mask=kpad3,
                                      block_k=128)
    jax.block_until_ready(x3)
    am_add = jnp.where(amask3, jnp.float32(NEG_MASK_VALUE), 0.0)
    kp_add = jnp.where(kpad3, jnp.float32(NEG_MASK_VALUE), 0.0).reshape(bs, 1, 1, seq_k)
    x3_ref, _ = _reference(query, key3, value3, params, nhead, am_add + kp_add)
    assert np.allclose(np.asarray(x3), np.asarray(x3_ref), atol=2e-2, rtol=2e-2)
    assert attn3 is None

    print("KERNEL_OK")
</pallas_src>

<mosaic_0001>
module attributes {stable_mosaic.version = 11 : i64} {
  func.func @kernel(%arg0: i32, %arg1: i32, %arg2: i32, %arg3: memref<1x8x32xbf16, #tpu.memory_space<vmem>>, %arg4: memref<1x8x8xbf16, #tpu.memory_space<vmem>>, %arg5: memref<1x8x8xbf16, #tpu.memory_space<vmem>>, %arg6: memref<32x32xbf16, #tpu.memory_space<vmem>>, %arg7: memref<1x32xf32, #tpu.memory_space<vmem>>, %arg8: memref<32x32xbf16, #tpu.memory_space<vmem>>, %arg9: memref<1x32xf32, #tpu.memory_space<vmem>>, %arg10: memref<1x8x32xf32, #tpu.memory_space<vmem>>, %arg11: memref<1x4x8x8xbf16, #tpu.memory_space<vmem>>, %arg12: memref<32x8xbf16, #tpu.memory_space<vmem>>, %arg13: memref<4x8x1xf32, #tpu.memory_space<vmem>>, %arg14: memref<4x8x1xf32, #tpu.memory_space<vmem>>, %arg15: memref<4x8x8xf32, #tpu.memory_space<vmem>>) attributes {dimension_semantics = [#tpu.dimension_semantics<parallel>, #tpu.dimension_semantics<parallel>, #tpu.dimension_semantics<arbitrary>], iteration_bounds = array<i64: 2, 1, 1>, scalar_prefetch = 0 : i64, scratch_operands = 4 : i64, tpu.core_type = #tpu.core_type<tc>, window_params = [{transform_indices = @transform_0, window_bounds = array<i64: 1, 8, 32>}, {transform_indices = @transform_1, window_bounds = array<i64: 1, 8, 8>}, {transform_indices = @transform_2, window_bounds = array<i64: 1, 8, 8>}, {pipeline_mode = #tpu.pipeline_mode<synchronous>, transform_indices = @transform_3, window_bounds = array<i64: 32, 32>}, {pipeline_mode = #tpu.pipeline_mode<synchronous>, transform_indices = @transform_4, window_bounds = array<i64: 1, 32>}, {pipeline_mode = #tpu.pipeline_mode<synchronous>, transform_indices = @transform_5, window_bounds = array<i64: 32, 32>}, {pipeline_mode = #tpu.pipeline_mode<synchronous>, transform_indices = @transform_6, window_bounds = array<i64: 1, 32>}, {transform_indices = @transform_7, window_bounds = array<i64: 1, 8, 32>}, {transform_indices = @transform_8, window_bounds = array<i64: 1, 4, 8, 8>}]} {
    %c0_i32 = arith.constant 0 : i32
    %0 = arith.cmpi eq, %arg2, %c0_i32 : i32
    %1 = arith.extui %0 : i1 to i32
    %c0_i32_0 = arith.constant 0 : i32
    %2 = arith.cmpi ne, %1, %c0_i32_0 : i32
    scf.if %2 {
      %c0_31 = arith.constant 0 : index
      %c0_32 = arith.constant 0 : index
      %c0_33 = arith.constant 0 : index
      %38 = vector.load %arg3[%c0_31, %c0_32, %c0_33] : memref<1x8x32xbf16, #tpu.memory_space<vmem>>, vector<1x8x32xbf16>
      %39 = vector.shape_cast %38 : vector<1x8x32xbf16> to vector<8x32xbf16>
      %c0_34 = arith.constant 0 : index
      %c0_35 = arith.constant 0 : index
      %40 = vector.load %arg6[%c0_34, %c0_35] : memref<32x32xbf16, #tpu.memory_space<vmem>>, vector<32x32xbf16>
      %cst_36 = arith.constant dense<0.000000e+00> : vector<8x32xf32>
      %41 = tpu.matmul %39, %40, %cst_36 {dimension_numbers = #tpu.dot_dimension_numbers<[1], [0], [0], [1], [0, 0, 1, 1], [], []>} : vector<8x32xbf16>, vector<32x32xbf16>, vector<8x32xf32> -> vector<8x32xf32>
      %c0_37 = arith.constant 0 : index
      %c0_38 = arith.constant 0 : index
      %42 = vector.load %arg7[%c0_37, %c0_38] : memref<1x32xf32, #tpu.memory_space<vmem>>, vector<1x32xf32>
      %43 = vector.broadcast %42 : vector<1x32xf32> to vector<8x32xf32>
      %44 = arith.addf %41, %43 : vector<8x32xf32>
      %45 = vector.extract_strided_slice %44 {offsets = [0, 0], sizes = [8, 8], strides = [1, 1]} : vector<8x32xf32> to vector<8x8xf32>
      %46 = arith.truncf %45 : vector<8x8xf32> to vector<8x8xbf16>
      %c0_39 = arith.constant 0 : index
      %c0_40 = arith.constant 0 : index
      %47 = vector.load %arg12[%c0_39, %c0_40] : memref<32x8xbf16, #tpu.memory_space<vmem>>, vector<8x8xbf16>
      tpu.vector_store %arg12[%c0_39, %c0_40], %46 {strides = array<i32>} : memref<32x8xbf16, #tpu.memory_space<vmem>>, vector<8x8xbf16>,
      %48 = vector.extract_strided_slice %44 {offsets = [0, 8], sizes = [8, 8], strides = [1, 1]} : vector<8x32xf32> to vector<8x8xf32>
      %49 = arith.truncf %48 : vector<8x8xf32> to vector<8x8xbf16>
      %c8 = arith.constant 8 : index
      %c0_41 = arith.constant 0 : index
      %50 = vector.load %arg12[%c8, %c0_41] : memref<32x8xbf16, #tpu.memory_space<vmem>>, vector<8x8xbf16>
      tpu.vector_store %arg12[%c8, %c0_41], %49 {strides = array<i32>} : memref<32x8xbf16, #tpu.memory_space<vmem>>, vector<8x8xbf16>,
      %51 = vector.extract_strided_slice %44 {offsets = [0, 16], sizes = [8, 8], strides = [1, 1]} : vector<8x32xf32> to vector<8x8xf32>
      %52 = arith.truncf %51 : vector<8x8xf32> to vector<8x8xbf16>
      %c16 = arith.constant 16 : index
      %c0_42 = arith.constant 0 : index
      %53 = vector.load %arg12[%c16, %c0_42] : memref<32x8xbf16, #tpu.memory_space<vmem>>, vector<8x8xbf16>
      tpu.vector_store %arg12[%c16, %c0_42], %52 {strides = array<i32>} : memref<32x8xbf16, #tpu.memory_space<vmem>>, vector<8x8xbf16>,
      %54 = vector.extract_strided_slice %44 {offsets = [0, 24], sizes = [8, 8], strides = [1, 1]} : vector<8x32xf32> to vector<8x8xf32>
      %55 = arith.truncf %54 : vector<8x8xf32> to vector<8x8xbf16>
      %c24 = arith.constant 24 : index
      %c0_43 = arith.constant 0 : index
      %56 = vector.load %arg12[%c24, %c0_43] : memref<32x8xbf16, #tpu.memory_space<vmem>>, vector<8x8xbf16>
      tpu.vector_store %arg12[%c24, %c0_43], %55 {strides = array<i32>} : memref<32x8xbf16, #tpu.memory_space<vmem>>, vector<8x8xbf16>,
      %cst_44 = arith.constant 0xFF800000 : f32
      %57 = vector.broadcast %cst_44 : f32 to vector<4x8x1xf32>
      %c0_45 = arith.constant 0 : index
      %c0_46 = arith.constant 0 : index
      %c0_47 = arith.constant 0 : index
      %58 = vector.load %arg13[%c0_45, %c0_46, %c0_47] : memref<4x8x1xf32, #tpu.memory_space<vmem>>, vector<4x8x1xf32>
      tpu.vector_store %arg13[%c0_45, %c0_46, %c0_47], %57 {strides = array<i32>} : memref<4x8x1xf32, #tpu.memory_space<vmem>>, vector<4x8x1xf32>,
      %cst_48 = arith.constant 0.000000e+00 : f32
      %59 = vector.broadcast %cst_48 : f32 to vector<4x8x1xf32>
      %c0_49 = arith.constant 0 : index
      %c0_50 = arith.constant 0 : index
      %c0_51 = arith.constant 0 : index
      %60 = vector.load %arg14[%c0_49, %c0_50, %c0_51] : memref<4x8x1xf32, #tpu.memory_space<vmem>>, vector<4x8x1xf32>
      tpu.vector_store %arg14[%c0_49, %c0_50, %c0_51], %59 {strides = array<i32>} : memref<4x8x1xf32, #tpu.memory_space<vmem>>, vector<4x8x1xf32>,
      %cst_52 = arith.constant 0.000000e+00 : f32
      %61 = vector.broadcast %cst_52 : f32 to vector<4x8x8xf32>
      %c0_53 = arith.constant 0 : index
      %c0_54 = arith.constant 0 : index
      %c0_55 = arith.constant 0 : index
      %62 = vector.load %arg15[%c0_53, %c0_54, %c0_55] : memref<4x8x8xf32, #tpu.memory_space<vmem>>, vector<4x8x8xf32>
      tpu.vector_store %arg15[%c0_53, %c0_54, %c0_55], %61 {strides = array<i32>} : memref<4x8x8xf32, #tpu.memory_space<vmem>>, vector<4x8x8xf32>,
    } else {
    }
    %c0 = arith.constant 0 : index
    %c0_1 = arith.constant 0 : index
    %3 = vector.load %arg12[%c0, %c0_1] : memref<32x8xbf16, #tpu.memory_space<vmem>>, vector<32x8xbf16>
    %c0_2 = arith.constant 0 : index
    %c0_3 = arith.constant 0 : index
    %c0_4 = arith.constant 0 : index
    %4 = vector.load %arg4[%c0_2, %c0_3, %c0_4] : memref<1x8x8xbf16, #tpu.memory_space<vmem>>, vector<1x8x8xbf16>
    %5 = vector.shape_cast %4 : vector<1x8x8xbf16> to vector<8x8xbf16>
    %cst = arith.constant dense<0.000000e+00> : vector<32x8xf32>
    %6 = tpu.matmul %3, %5, %cst {dimension_numbers = #tpu.dot_dimension_numbers<[1], [1], [0], [0], [0, 0, 1, 0], [], []>} : vector<32x8xbf16>, vector<8x8xbf16>, vector<32x8xf32> -> vector<32x8xf32>
    %7 = vector.shape_cast %6 : vector<32x8xf32> to vector<4x8x8xf32>
    %c0_5 = arith.constant 0 : index
    %c0_6 = arith.constant 0 : index
    %c0_7 = arith.constant 0 : index
    %8 = vector.load %arg13[%c0_5, %c0_6, %c0_7] : memref<4x8x1xf32, #tpu.memory_space<vmem>>, vector<4x8x1xf32>
    %cst_8 = arith.constant dense<0xFF800000> : vector<4x8xf32>
    %9 = vector.multi_reduction <maximumf>, %7, %cst_8 [2] : vector<4x8x8xf32> to vector<4x8xf32>
    %10 = vector.shape_cast %9 : vector<4x8xf32> to vector<4x8x1xf32>
    %11 = arith.maximumf %8, %10 : vector<4x8x1xf32>
    %12 = arith.subf %8, %11 : vector<4x8x1xf32>
    %13 = math.exp %12 : vector<4x8x1xf32>
    %14 = vector.broadcast %11 : vector<4x8x1xf32> to vector<4x8x8xf32>
    %15 = arith.subf %7, %14 : vector<4x8x8xf32>
    %16 = math.exp %15 : vector<4x8x8xf32>
    %c0_9 = arith.constant 0 : index
    %c0_10 = arith.constant 0 : index
    %c0_11 = arith.constant 0 : index
    %17 = vector.load %arg14[%c0_9, %c0_10, %c0_11] : memref<4x8x1xf32, #tpu.memory_space<vmem>>, vector<4x8x1xf32>
    %18 = arith.mulf %13, %17 : vector<4x8x1xf32>
    %cst_12 = arith.constant dense<0.000000e+00> : vector<4x8xf32>
    %19 = vector.multi_reduction <add>, %16, %cst_12 [2] : vector<4x8x8xf32> to vector<4x8xf32>
    %20 = vector.shape_cast %19 : vector<4x8xf32> to vector<4x8x1xf32>
    %21 = arith.addf %18, %20 : vector<4x8x1xf32>
    %c0_13 = arith.constant 0 : index
    %c0_14 = arith.constant 0 : index
    %c0_15 = arith.constant 0 : index
    %22 = vector.load %arg14[%c0_13, %c0_14, %c0_15] : memref<4x8x1xf32, #tpu.memory_space<vmem>>, vector<4x8x1xf32>
    tpu.vector_store %arg14[%c0_13, %c0_14, %c0_15], %21 {strides = array<i32>} : memref<4x8x1xf32, #tpu.memory_space<vmem>>, vector<4x8x1xf32>,
    %23 = vector.shape_cast %16 : vector<4x8x8xf32> to vector<32x8xf32>
    %24 = arith.truncf %23 : vector<32x8xf32> to vector<32x8xbf16>
    %c0_16 = arith.constant 0 : index
    %c0_17 = arith.constant 0 : index
    %c0_18 = arith.constant 0 : index
    %25 = vector.load %arg5[%c0_16, %c0_17, %c0_18] : memref<1x8x8xbf16, #tpu.memory_space<vmem>>, vector<1x8x8xbf16>
    %26 = vector.shape_cast %25 : vector<1x8x8xbf16> to vector<8x8xbf16>
    %cst_19 = arith.constant dense<0.000000e+00> : vector<32x8xf32>
    %27 = tpu.matmul %24, %26, %cst_19 {dimension_numbers = #tpu.dot_dimension_numbers<[1], [0], [0], [1], [0, 0, 1, 1], [], []>} : vector<32x8xbf16>, vector<8x8xbf16>, vector<32x8xf32> -> vector<32x8xf32>
    %c0_20 = arith.constant 0 : index
    %c0_21 = arith.constant 0 : index
    %c0_22 = arith.constant 0 : index
    %28 = vector.load %arg15[%c0_20, %c0_21, %c0_22] : memref<4x8x8xf32, #tpu.memory_space<vmem>>, vector<4x8x8xf32>
    %29 = vector.broadcast %13 : vector<4x8x1xf32> to vector<4x8x8xf32>
    %30 = arith.mulf %29, %28 : vector<4x8x8xf32>
    %31 = vector.shape_cast %27 : vector<32x8xf32> to vector<4x8x8xf32>
    %32 = arith.addf %30, %31 : vector<4x8x8xf32>
    %c0_23 = arith.constant 0 : index
    %c0_24 = arith.constant 0 : index
    %c0_25 = arith.constant 0 : index
    %33 = vector.load %arg15[%c0_23, %c0_24, %c0_25] : memref<4x8x8xf32, #tpu.memory_space<vmem>>, vector<4x8x8xf32>
    tpu.vector_store %arg15[%c0_23, %c0_24, %c0_25], %32 {strides = array<i32>} : memref<4x8x8xf32, #tpu.memory_space<vmem>>, vector<4x8x8xf32>,
    %c0_26 = arith.constant 0 : index
    %c0_27 = arith.constant 0 : index
    %c0_28 = arith.constant 0 : index
    %34 = vector.load %arg13[%c0_26, %c0_27, %c0_28] : memref<4x8x1xf32, #tpu.memory_space<vmem>>, vector<4x8x1xf32>
    tpu.vector_store %arg13[%c0_26, %c0_27, %c0_28], %11 {strides = array<i32>} : memref<4x8x1xf32, #tpu.memory_space<vmem>>, vector<4x8x1xf32>,
    %c0_i32_29 = arith.constant 0 : i32
    %35 = arith.cmpi eq, %arg2, %c0_i32_29 : i32
    %36 = arith.extui %35 : i1 to i32
    %c0_i32_30 = arith.constant 0 : i32
    %37 = arith.cmpi ne, %36, %c0_i32_30 : i32
    scf.if %37 {
      %c0_31 = arith.constant 0 : index
      %c0_32 = arith.constant 0 : index
      %c0_33 = arith.constant 0 : index
      %38 = vector.load %arg14[%c0_31, %c0_32, %c0_33] : memref<4x8x1xf32, #tpu.memory_space<vmem>>, vector<4x8x1xf32>
      %39 = tpu.reciprocal %38 {approx = true} : vector<4x8x1xf32> -> vector<4x8x1xf32>
      %c0_34 = arith.constant 0 : index
      %c0_35 = arith.constant 0 : index
      %c0_36 = arith.constant 0 : index
      %40 = vector.load %arg15[%c0_34, %c0_35, %c0_36] : memref<4x8x8xf32, #tpu.memory_space<vmem>>, vector<1x8x8xf32>
      %41 = vector.shape_cast %40 : vector<1x8x8xf32> to vector<8x8xf32>
      %42 = vector.extract_strided_slice %39 {offsets = [0, 0, 0], sizes = [1, 8, 1], strides = [1, 1, 1]} : vector<4x8x1xf32> to vector<1x8x1xf32>
      %43 = vector.shape_cast %42 : vector<1x8x1xf32> to vector<8x1xf32>
      %44 = vector.broadcast %43 : vector<8x1xf32> to vector<8x8xf32>
      %45 = arith.mulf %41, %44 : vector<8x8xf32>
      %46 = arith.truncf %45 : vector<8x8xf32> to vector<8x8xbf16>
      %c1 = arith.constant 1 : index
      %c0_37 = arith.constant 0 : index
      %c0_38 = arith.constant 0 : index
      %47 = vector.load %arg15[%c1, %c0_37, %c0_38] : memref<4x8x8xf32, #tpu.memory_space<vmem>>, vector<1x8x8xf32>
      %48 = vector.shape_cast %47 : vector<1x8x8xf32> to vector<8x8xf32>
      %49 = vector.extract_strided_slice %39 {offsets = [1, 0, 0], sizes = [1, 8, 1], strides = [1, 1, 1]} : vector<4x8x1xf32> to vector<1x8x1xf32>
      %50 = vector.shape_cast %49 : vector<1x8x1xf32> to vector<8x1xf32>
      %51 = vector.broadcast %50 : vector<8x1xf32> to vector<8x8xf32>
      %52 = arith.mulf %48, %51 : vector<8x8xf32>
      %53 = arith.truncf %52 : vector<8x8xf32> to vector<8x8xbf16>
      %c2 = arith.constant 2 : index
      %c0_39 = arith.constant 0 : index
      %c0_40 = arith.constant 0 : index
      %54 = vector.load %arg15[%c2, %c0_39, %c0_40] : memref<4x8x8xf32, #tpu.memory_space<vmem>>, vector<1x8x8xf32>
      %55 = vector.shape_cast %54 : vector<1x8x8xf32> to vector<8x8xf32>
      %56 = vector.extract_strided_slice %39 {offsets = [2, 0, 0], sizes = [1, 8, 1], strides = [1, 1, 1]} : vector<4x8x1xf32> to vector<1x8x1xf32>
      %57 = vector.shape_cast %56 : vector<1x8x1xf32> to vector<8x1xf32>
      %58 = vector.broadcast %57 : vector<8x1xf32> to vector<8x8xf32>
      %59 = arith.mulf %55, %58 : vector<8x8xf32>
      %60 = arith.truncf %59 : vector<8x8xf32> to vector<8x8xbf16>
      %c3 = arith.constant 3 : index
      %c0_41 = arith.constant 0 : index
      %c0_42 = arith.constant 0 : index
      %61 = vector.load %arg15[%c3, %c0_41, %c0_42] : memref<4x8x8xf32, #tpu.memory_space<vmem>>, vector<1x8x8xf32>
      %62 = vector.shape_cast %61 : vector<1x8x8xf32> to vector<8x8xf32>
      %63 = vector.extract_strided_slice %39 {offsets = [3, 0, 0], sizes = [1, 8, 1], strides = [1, 1, 1]} : vector<4x8x1xf32> to vector<1x8x1xf32>
      %64 = vector.shape_cast %63 : vector<1x8x1xf32> to vector<8x1xf32>
      %65 = vector.broadcast %64 : vector<8x1xf32> to vector<8x8xf32>
      %66 = arith.mulf %62, %65 : vector<8x8xf32>
      %67 = arith.truncf %66 : vector<8x8xf32> to vector<8x8xbf16>
      %68 = tpu.concatenate %46, %53, %60, %67 in 1 : vector<8x8xbf16>, vector<8x8xbf16>, vector<8x8xbf16>, vector<8x8xbf16> -> vector<8x32xbf16>
      %c0_43 = arith.constant 0 : index
      %c0_44 = arith.constant 0 : index
      %69 = vector.load %arg8[%c0_43, %c0_44] : memref<32x32xbf16, #tpu.memory_space<vmem>>, vector<32x32xbf16>
      %cst_45 = arith.constant dense<0.000000e+00> : vector<8x32xf32>
      %70 = tpu.matmul %68, %69, %cst_45 {dimension_numbers = #tpu.dot_dimension_numbers<[1], [0], [0], [1], [0, 0, 1, 1], [], []>} : vector<8x32xbf16>, vector<32x32xbf16>, vector<8x32xf32> -> vector<8x32xf32>
      %c0_46 = arith.constant 0 : index
      %c0_47 = arith.constant 0 : index
      %71 = vector.load %arg9[%c0_46, %c0_47] : memref<1x32xf32, #tpu.memory_space<vmem>>, vector<1x32xf32>
      %72 = vector.broadcast %71 : vector<1x32xf32> to vector<8x32xf32>
      %73 = arith.addf %70, %72 : vector<8x32xf32>
      %c0_48 = arith.constant 0 : index
      %c0_49 = arith.constant 0 : index
      %c0_50 = arith.constant 0 : index
      %74 = vector.load %arg10[%c0_48, %c0_49, %c0_50] : memref<1x8x32xf32, #tpu.memory_space<vmem>>, vector<1x8x32xf32>
      %75 = vector.shape_cast %74 : vector<1x8x32xf32> to vector<8x32xf32>
      %76 = vector.shape_cast %73 : vector<8x32xf32> to vector<1x8x32xf32>
      tpu.vector_store %arg10[%c0_48, %c0_49, %c0_50], %76 {strides = array<i32>} : memref<1x8x32xf32, #tpu.memory_space<vmem>>, vector<1x8x32xf32>,
      %77 = vector.broadcast %39 : vector<4x8x1xf32> to vector<4x8x8xf32>
      %78 = arith.mulf %16, %77 : vector<4x8x8xf32>
      %79 = arith.truncf %78 : vector<4x8x8xf32> to vector<4x8x8xbf16>
      %c0_51 = arith.constant 0 : index
      %c0_52 = arith.constant 0 : index
      %c0_53 = arith.constant 0 : index
      %c0_54 = arith.constant 0 : index
      %80 = vector.load %arg11[%c0_51, %c0_52, %c0_53, %c0_54] : memref<1x4x8x8xbf16, #tpu.memory_space<vmem>>, vector<1x4x8x8xbf16>
      %81 = vector.shape_cast %80 : vector<1x4x8x8xbf16> to vector<4x8x8xbf16>
      %82 = vector.shape_cast %79 : vector<4x8x8xbf16> to vector<1x4x8x8xbf16>
      tpu.vector_store %arg11[%c0_51, %c0_52, %c0_53, %c0_54], %82 {strides = array<i32>} : memref<1x4x8x8xbf16, #tpu.memory_space<vmem>>, vector<1x4x8x8xbf16>,
    } else {
    }
    return
  }
  func.func @transform_0(%arg0: i32, %arg1: i32, %arg2: i32) -> (i32, i32, i32) {
    %c0_i32 = arith.constant 0 : i32
    %c0_i32_0 = arith.constant 0 : i32
    return %arg0, %arg1, %c0_i32 : i32, i32, i32
  }
  func.func @transform_1(%arg0: i32, %arg1: i32, %arg2: i32) -> (i32, i32, i32) {
    %c0_i32 = arith.constant 0 : i32
    %c0_i32_0 = arith.constant 0 : i32
    return %arg0, %arg2, %c0_i32 : i32, i32, i32
  }
  func.func @transform_2(%arg0: i32, %arg1: i32, %arg2: i32) -> (i32, i32, i32) {
    %c0_i32 = arith.constant 0 : i32
    %c0_i32_0 = arith.constant 0 : i32
    return %arg0, %arg2, %c0_i32 : i32, i32, i32
  }
  func.func @transform_3(%arg0: i32, %arg1: i32, %arg2: i32) -> (i32, i32) {
    %c0_i32 = arith.constant 0 : i32
    %c0_i32_0 = arith.constant 0 : i32
    %c0_i32_1 = arith.constant 0 : i32
    return %c0_i32, %c0_i32_0 : i32, i32
  }
  func.func @transform_4(%arg0: i32, %arg1: i32, %arg2: i32) -> (i32, i32) {
    %c0_i32 = arith.constant 0 : i32
    %c0_i32_0 = arith.constant 0 : i32
    %c0_i32_1 = arith.constant 0 : i32
    return %c0_i32, %c0_i32_0 : i32, i32
  }
  func.func @transform_5(%arg0: i32, %arg1: i32, %arg2: i32) -> (i32, i32) {
    %c0_i32 = arith.constant 0 : i32
    %c0_i32_0 = arith.constant 0 : i32
    %c0_i32_1 = arith.constant 0 : i32
    return %c0_i32, %c0_i32_0 : i32, i32
  }
  func.func @transform_6(%arg0: i32, %arg1: i32, %arg2: i32) -> (i32, i32) {
    %c0_i32 = arith.constant 0 : i32
    %c0_i32_0 = arith.constant 0 : i32
    %c0_i32_1 = arith.constant 0 : i32
    return %c0_i32, %c0_i32_0 : i32, i32
  }
  func.func @transform_7(%arg0: i32, %arg1: i32, %arg2: i32) -> (i32, i32, i32) {
    %c0_i32 = arith.constant 0 : i32
    %c0_i32_0 = arith.constant 0 : i32
    return %arg0, %arg1, %c0_i32 : i32, i32, i32
  }
  func.func @transform_8(%arg0: i32, %arg1: i32, %arg2: i32) -> (i32, i32, i32, i32) {
    %c0_i32 = arith.constant 0 : i32
    %c0_i32_0 = arith.constant 0 : i32
    %c0_i32_1 = arith.constant 0 : i32
    return %arg0, %c0_i32, %arg1, %c0_i32_0 : i32, i32, i32, i32
  }
}

</mosaic_0001>

<llo_original>
// kernel: tpu_custom_call.1
$region0: #{tpu_custom_call.1}
  #allocation0 [shape = 'u32[]', space=smem, size = 0x4, offset = 0x4, fixed_abs, tag = 'smem constant byte address 0x4 - core index']
  #allocation1 [shape = 'u32[72,128]{1,0:T(1,128)}', space=vmem, size = 0x9000, scoped, tag = 'internal scratch']
  #allocation2 [shape = 'bf16[32,8]{1,0:T(8,128)(2,1)}', space=vmem, size = 0x2000, scoped, tag = 'scratch operand']
  #allocation3 [shape = 'f32[4,8,1]{2,1,0:T(8,128)}', space=vmem, size = 0x4000, scoped, tag = 'scratch operand']
  #allocation4 [shape = 'f32[4,8,1]{2,1,0:T(8,128)}', space=vmem, size = 0x4000, scoped, tag = 'scratch operand']
  #allocation5 [shape = 'f32[4,8,8]{2,1,0:T(8,128)}', space=vmem, size = 0x4000, scoped, tag = 'scratch operand']
  %s0 = inlined_call_operand.hbm [shape: bf16[2,8,32], index: 0, kind: input, shape index: {}]
  %s1 = inlined_call_operand.hbm [shape: bf16[2,8,8], index: 1, kind: input, shape index: {}]
  %s2 = inlined_call_operand.hbm [shape: bf16[2,8,8], index: 2, kind: input, shape index: {}]
  %s3 = inlined_call_operand.hbm [shape: bf16[32,32], index: 3, kind: input, shape index: {}]
  %s4 = inlined_call_operand.vmem [shape: f32[1,32], index: 4, kind: input, shape index: {}]
  %s5 = inlined_call_operand.hbm [shape: bf16[32,32], index: 5, kind: input, shape index: {}]
  %s6 = inlined_call_operand.vmem [shape: f32[1,32], index: 6, kind: input, shape index: {}]
  %s7 = inlined_call_operand.hbm [shape: f32[2,8,32], index: 7, kind: output, shape index: {0}]
  %s8 = inlined_call_operand.hbm [shape: bf16[2,4,8,8], index: 8, kind: output, shape index: {1}]
  %9 = xla_tuple %s7, %s8
  %s10 = sld [smem:[#allocation0]]
  $region97: #{tpu_custom_call.1} parent=0
    _
  %s12 = ssub.s32 1, %s10
  %s13 = scalar_select 0, %s12, %s10
  $region1: #{tpu_custom_call.1} parent=0
    #allocation6 [shape = 'u8[4096]{0}', space=vmem, size = 0x1000, scoped, tag = 'input window, operand 0']
    #allocation7 [shape = 's32[2]{0}', space=sflag, size = 0x8, scoped, tag = 'scoped memory for tpu_custom_call.1']
    #allocation8 [shape = 's32[2]{0}', space=sflag, size = 0x8, scoped, tag = 'scoped memory for tpu_custom_call.1']
    #allocation9 [shape = 'u8[4096]{0}', space=vmem, size = 0x1000, scoped, tag = 'input window, operand 1']
    #allocation10 [shape = 's32[2]{0}', space=sflag, size = 0x8, scoped, tag = 'scoped memory for tpu_custom_call.1']
    #allocation11 [shape = 'u8[4096]{0}', space=vmem, size = 0x1000, scoped, tag = 'input window, operand 2']
    #allocation12 [shape = 'u8[8192]{0}', space=vmem, size = 0x2000, scoped, tag = 'input window, operand 3, single buffered']
    #allocation13 [shape = 's32[1]{0}', space=sflag, size = 0x4, scoped, tag = 'scoped memory for tpu_custom_call.1']
    #allocation14 [shape = 'u8[8192]{0}', space=vmem, size = 0x2000, scoped, tag = 'input window, operand 5, single buffered']
    #allocation15 [shape = 'u8[8192]{0}', space=vmem, size = 0x2000, scoped, tag = 'output window, operand 0']
    #allocation16 [shape = 'u8[16384]{0}', space=vmem, size = 0x4000, scoped, tag = 'output window, operand 1']
    #allocation17 [shape = 's32[2]{0}', space=sflag, size = 0x8, scoped, tag = 'scoped memory for tpu_custom_call.1']
    %14 = vsyncpa [#allocation7], 0
    %s15 = scalar_lea.sflag [#allocation7], 1
    %16 = vsyncpa %s15, 0
    %17 = vsyncpa [#allocation10], 0
    %s18 = scalar_lea.sflag [#allocation10], 1
    %19 = vsyncpa %s18, 0
    %20 = vsyncpa [#allocation13], 0
    %21 = vsyncpa [#allocation8], 0
    %s22 = scalar_lea.sflag [#allocation8], 1
    %23 = vsyncpa %s22, 0
    %24 = vsyncpa [#allocation17], 0
    %s25 = scalar_lea.sflag [#allocation17], 1
    %26 = vsyncpa %s25, 0
    loop: start=0, step=1, limit=4
    $region2: #{tpu_custom_call.1} parent=1 // loop_pre_header
      _
    $region3: #{tpu_custom_call.1} parent=1 // loop_header
      %s28 = sphi 0, %s32
      %p29 = scmp.ge.s32.totalorder %s28, 4
      %s35 = sphi 0, %s54
      %s36 = sphi 0, %s50
      %s37 = sphi 0, %s46
      %s38 = sphi 0, %s35
      %s39 = sphi 0, %s36
      %s40 = sphi 0, %s37
      %s41 = sphi 0, %s38
      %s42 = sphi 0, %s39
      %s43 = sphi 0, %s40
      %s59 = sphi 0, %s61
      %s62 = sphi 0, %s59
      %s63 = sphi 0, %s62
      %s79 = sphi 0, %s63
      %s87 = sphi 0, %s89
      %s90 = sphi 0, %s87
      %s91 = sphi 0, %s90
      %s107 = sphi 0, %s91
      %s115 = sphi 0, %s117
      %s118 = sphi 0, %s115
      %s119 = sphi 0, %s118
      %s135 = sphi 0, %s119
      %s139 = sphi 0, %s139
      %s141 = sphi 0, %s139
      %s142 = sphi 0, %s141
      %s156 = sphi 0, %s142
      %s160 = sphi 0, %s160
      %s162 = sphi 0, %s160
      %s163 = sphi 0, %s162
      %s177 = sphi 0, %s163
      %s181 = sphi 0, %s181
      %s183 = sphi 0, %s181
      %s184 = sphi 0, %s183
      %s198 = sphi 0, %s184
      %s202 = sphi 0, %s202
      %s204 = sphi 0, %s202
      %s205 = sphi 0, %s204
      %s219 = sphi 0, %s205
      %s227 = sphi 0, %s229
      %s230 = sphi 0, %s227
      %s231 = sphi 0, %s230
      %s247 = sphi 0, %s231
      %s255 = sphi 0, %s257
      %s258 = sphi 0, %s255
      %s259 = sphi 0, %s258
      %s275 = sphi 0, %s259
    $region4: #{tpu_custom_call.1} parent=1 // loop_header_branch
      %31 = sbr.rel (%p29) target = $region8
    $region5: #{tpu_custom_call.1} parent=1 // loop_body
      %s33 = ssub.s32 %s28, 1
      %s34 = ssub.s32 %s28, 2
      %s44 = sadd.s32 1, %s37
      %p45 = scmp.ge.s32.totalorder %s44, 1
      %s46 = scalar_select %p45, 0, %s44
      %s47 = sadd.s32 1, %s36
      %s48 = scalar_select %p45, %s47, %s36
      %p49 = scmp.ge.s32.totalorder %s48, 1
      %s50 = scalar_select %p49, 0, %s48
      %s51 = sadd.s32 1, %s35
      %s52 = scalar_select %p49, %s51, %s35
      %p53 = scmp.ge.s32.totalorder %s52, 2
      %s54 = scalar_select %p53, 0, %s52
      %s55 = ssub.s32 %s35, %s54
      %s56 = ssub.s32 %s36, %s50
      %s57 = sor.u32 %s55, %s56
      %p58 = scmp.eq.s32.totalorder %s57, 0
      %s60 = sadd.s32 %s59, 1
      %s61 = scalar_select %p58, %s59, %s60
      %p64 = pneg %p58
      %p65 = scmp.eq.s32.totalorder %s28, 1
      %p66 = por %p64, %p65
      %p67 = scmp.ne.s32.totalorder %s59, %s62
      %p68 = scmp.eq.s32.totalorder %s28, 0
      %p69 = por %p67, %p68
      %p70 = scmp.ne.s32.totalorder %s59, %s62
      %p71 = scmp.eq.s32.totalorder %s33, 1
      %p72 = por %p70, %p71
      %p73 = scmp.ne.s32.totalorder %s62, %s63
      %p74 = scmp.eq.s32.totalorder %s33, 0
      %p75 = por %p73, %p74
      %p76 = scmp.ne.s32.totalorder %s62, %s63
      %p77 = scmp.eq.s32.totalorder %s34, 1
      %p78 = por %p76, %p77
      %p80 = scmp.ne.s32.totalorder %s63, %s79
      %p81 = scmp.eq.s32.totalorder %s34, 0
      %p82 = por %p80, %p81
      %s83 = ssub.s32 %s35, %s54
      %s84 = ssub.s32 %s37, %s46
      %s85 = sor.u32 %s83, %s84
      %p86 = scmp.eq.s32.totalorder %s85, 0
      %s88 = sadd.s32 %s87, 1
      %s89 = scalar_select %p86, %s87, %s88
      %p92 = pneg %p86
      %p93 = scmp.eq.s32.totalorder %s28, 1
      %p94 = por %p92, %p93
      %p95 = scmp.ne.s32.totalorder %s87, %s90
      %p96 = scmp.eq.s32.totalorder %s28, 0
      %p97 = por %p95, %p96
      %p98 = scmp.ne.s32.totalorder %s87, %s90
      %p99 = scmp.eq.s32.totalorder %s33, 1
      %p100 = por %p98, %p99
      %p101 = scmp.ne.s32.totalorder %s90, %s91
      %p102 = scmp.eq.s32.totalorder %s33, 0
      %p103 = por %p101, %p102
      %p104 = scmp.ne.s32.totalorder %s90, %s91
      %p105 = scmp.eq.s32.totalorder %s34, 1
      %p106 = por %p104, %p105
      %p108 = scmp.ne.s32.totalorder %s91, %s107
      %p109 = scmp.eq.s32.totalorder %s34, 0
      %p110 = por %p108, %p109
      %s111 = ssub.s32 %s35, %s54
      %s112 = ssub.s32 %s37, %s46
      %s113 = sor.u32 %s111, %s112
      %p114 = scmp.eq.s32.totalorder %s113, 0
      %s116 = sadd.s32 %s115, 1
      %s117 = scalar_select %p114, %s115, %s116
      %p120 = pneg %p114
      %p121 = scmp.eq.s32.totalorder %s28, 1
      %p122 = por %p120, %p121
      %p123 = scmp.ne.s32.totalorder %s115, %s118
      %p124 = scmp.eq.s32.totalorder %s28, 0
      %p125 = por %p123, %p124
      %p126 = scmp.ne.s32.totalorder %s115, %s118
      %p127 = scmp.eq.s32.totalorder %s33, 1
      %p128 = por %p126, %p127
      %p129 = scmp.ne.s32.totalorder %s118, %s119
      %p130 = scmp.eq.s32.totalorder %s33, 0
      %p131 = por %p129, %p130
      %p132 = scmp.ne.s32.totalorder %s118, %s119
      %p133 = scmp.eq.s32.totalorder %s34, 1
      %p134 = por %p132, %p133
      %p136 = scmp.ne.s32.totalorder %s119, %s135
      %p137 = scmp.eq.s32.totalorder %s34, 0
      %p138 = por %p136, %p137
      %s140 = sadd.s32 %s139, 1
      %p143 = scmp.eq.s32.totalorder %s28, 1
      %p144 = scmp.ne.s32.totalorder %s139, %s141
      %p145 = scmp.eq.s32.totalorder %s28, 0
      %p146 = por %p144, %p145
      %p147 = scmp.ne.s32.totalorder %s139, %s141
      %p148 = scmp.eq.s32.totalorder %s33, 1
      %p149 = por %p147, %p148
      %p150 = scmp.ne.s32.totalorder %s141, %s142
      %p151 = scmp.eq.s32.totalorder %s33, 0
      %p152 = por %p150, %p151
      %p153 = scmp.ne.s32.totalorder %s141, %s142
      %p154 = scmp.eq.s32.totalorder %s34, 1
      %p155 = por %p153, %p154
      %p157 = scmp.ne.s32.totalorder %s142, %s156
      %p158 = scmp.eq.s32.totalorder %s34, 0
      %p159 = por %p157, %p158
      %s161 = sadd.s32 %s160, 1
      %p164 = scmp.eq.s32.totalorder %s28, 1
      %p165 = scmp.ne.s32.totalorder %s160, %s162
      %p166 = scmp.eq.s32.totalorder %s28, 0
      %p167 = por %p165, %p166
      %p168 = scmp.ne.s32.totalorder %s160, %s162
      %p169 = scmp.eq.s32.totalorder %s33, 1
      %p170 = por %p168, %p169
      %p171 = scmp.ne.s32.totalorder %s162, %s163
      %p172 = scmp.eq.s32.totalorder %s33, 0
      %p173 = por %p171, %p172
      %p174 = scmp.ne.s32.totalorder %s162, %s163
      %p175 = scmp.eq.s32.totalorder %s34, 1
      %p176 = por %p174, %p175
      %p178 = scmp.ne.s32.totalorder %s163, %s177
      %p179 = scmp.eq.s32.totalorder %s34, 0
      %p180 = por %p178, %p179
      %s182 = sadd.s32 %s181, 1
      %p185 = scmp.eq.s32.totalorder %s28, 1
      %p186 = scmp.ne.s32.totalorder %s181, %s183
      %p187 = scmp.eq.s32.totalorder %s28, 0
      %p188 = por %p186, %p187
      %p189 = scmp.ne.s32.totalorder %s181, %s183
      %p190 = scmp.eq.s32.totalorder %s33, 1
      %p191 = por %p189, %p190
      %p192 = scmp.ne.s32.totalorder %s183, %s184
      %p193 = scmp.eq.s32.totalorder %s33, 0
      %p194 = por %p192, %p193
      %p195 = scmp.ne.s32.totalorder %s183, %s184
      %p196 = scmp.eq.s32.totalorder %s34, 1
      %p197 = por %p195, %p196
      %p199 = scmp.ne.s32.totalorder %s184, %s198
      %p200 = scmp.eq.s32.totalorder %s34, 0
      %p201 = por %p199, %p200
      %s203 = sadd.s32 %s202, 1
      %p206 = scmp.eq.s32.totalorder %s28, 1
      %p207 = scmp.ne.s32.totalorder %s202, %s204
      %p208 = scmp.eq.s32.totalorder %s28, 0
      %p209 = por %p207, %p208
      %p210 = scmp.ne.s32.totalorder %s202, %s204
      %p211 = scmp.eq.s32.totalorder %s33, 1
      %p212 = por %p210, %p211
      %p213 = scmp.ne.s32.totalorder %s204, %s205
      %p214 = scmp.eq.s32.totalorder %s33, 0
      %p215 = por %p213, %p214
      %p216 = scmp.ne.s32.totalorder %s204, %s205
      %p217 = scmp.eq.s32.totalorder %s34, 1
      %p218 = por %p216, %p217
      %p220 = scmp.ne.s32.totalorder %s205, %s219
      %p221 = scmp.eq.s32.totalorder %s34, 0
      %p222 = por %p220, %p221
      %s223 = ssub.s32 %s35, %s54
      %s224 = ssub.s32 %s36, %s50
      %s225 = sor.u32 %s223, %s224
      %p226 = scmp.eq.s32.totalorder %s225, 0
      %s228 = sadd.s32 %s227, 1
      %s229 = scalar_select %p226, %s227, %s228
      %p232 = pneg %p226
      %p233 = scmp.eq.s32.totalorder %s28, 1
      %p234 = por %p232, %p233
      %p235 = scmp.ne.s32.totalorder %s227, %s230
      %p236 = scmp.eq.s32.totalorder %s28, 0
      %p237 = por %p235, %p236
      %p238 = scmp.ne.s32.totalorder %s227, %s230
      %p239 = scmp.eq.s32.totalorder %s33, 1
      %p240 = por %p238, %p239
      %p241 = scmp.ne.s32.totalorder %s230, %s231
      %p242 = scmp.eq.s32.totalorder %s33, 0
      %p243 = por %p241, %p242
      %p244 = scmp.ne.s32.totalorder %s230, %s231
      %p245 = scmp.eq.s32.totalorder %s34, 1
      %p246 = por %p244, %p245
      %p248 = scmp.ne.s32.totalorder %s231, %s247
      %p249 = scmp.eq.s32.totalorder %s34, 0
      %p250 = por %p248, %p249
      %s251 = ssub.s32 %s35, %s54
      %s252 = ssub.s32 %s36, %s50
      %s253 = sor.u32 %s251, %s252
      %p254 = scmp.eq.s32.totalorder %s253, 0
      %s256 = sadd.s32 %s255, 1
      %s257 = scalar_select %p254, %s255, %s256
      %p260 = pneg %p254
      %p261 = scmp.eq.s32.totalorder %s28, 1
      %p262 = por %p260, %p261
      %p263 = scmp.ne.s32.totalorder %s255, %s258
      %p264 = scmp.eq.s32.totalorder %s28, 0
      %p265 = por %p263, %p264
      %p266 = scmp.ne.s32.totalorder %s255, %s258
      %p267 = scmp.eq.s32.totalorder %s33, 1
      %p268 = por %p266, %p267
      %p269 = scmp.ne.s32.totalorder %s258, %s259
      %p270 = scmp.eq.s32.totalorder %s33, 0
      %p271 = por %p269, %p270
      %p272 = scmp.ne.s32.totalorder %s258, %s259
      %p273 = scmp.eq.s32.totalorder %s34, 1
      %p274 = por %p272, %p273
      %p276 = scmp.ne.s32.totalorder %s259, %s275
      %p277 = scmp.eq.s32.totalorder %s34, 0
      %p278 = por %p276, %p277
      %p279 = scmp.le.s32.totalorder 1, %s28
      %p280 = scmp.lt.s32.totalorder %s28, 3
      %p281 = pnand %p279, %p280
      %p282 = pneg %p281
      // Predicated region
      $region9: #{tpu_custom_call.1} parent=5 // pred_check
        _
      $region10: #{tpu_custom_call.1} parent=5 // pred_check_branch
        %284 = sbr.rel (%p281) target = $region12
      $region11: #{tpu_custom_call.1} parent=5 // pred_region
        %s285 = ssub.s32 %s28, 1
        // Predicated region
        $region13: #{tpu_custom_call.1} parent=11 // pred_check
          %p286 = pneg %p152
        $region14: #{tpu_custom_call.1} parent=11 // pred_check_branch
          %288 = sbr.rel (%p286) target = $region16
        $region15: #{tpu_custom_call.1} parent=11 // pred_region
          %290 = vsyncadd [#allocation13], 0
          %s291 = sshll.u32 %s3, 4
          %s292 = int_to_ptr.hbm [resolvable:$true] %s291
          %s293 = sshll.u32 [#allocation12], 4
          %s294 = int_to_ptr.vmem [resolvable:$true] %s293
          %299 = dma.hbm_to_vmem [thread:$0]  %s292, 256, %s294, [#allocation13], 64, 64, 4
        $region16: #{tpu_custom_call.1} parent=11 // pred_fallthru
          _
        // Predicated region
        $region17: #{tpu_custom_call.1} parent=11 // pred_check
          %p300 = pneg %p173
        $region18: #{tpu_custom_call.1} parent=11 // pred_check_branch
          %302 = sbr.rel (%p300) target = $region20
        $region19: #{tpu_custom_call.1} parent=11 // pred_region
          _
        $region20: #{tpu_custom_call.1} parent=11 // pred_fallthru
          _
        // Predicated region
        $region21: #{tpu_custom_call.1} parent=11 // pred_check
          %p303 = pneg %p194
        $region22: #{tpu_custom_call.1} parent=11 // pred_check_branch
          %305 = sbr.rel (%p303) target = $region24
        $region23: #{tpu_custom_call.1} parent=11 // pred_region
          %307 = vsyncadd [#allocation13], 0
          %s308 = sshll.u32 %s5, 4
          %s309 = int_to_ptr.hbm [resolvable:$true] %s308
          %s310 = sshll.u32 [#allocation14], 4
          %s311 = int_to_ptr.vmem [resolvable:$true] %s310
          %316 = dma.hbm_to_vmem [thread:$0]  %s309, 256, %s311, [#allocation13], 64, 64, 4
        $region24: #{tpu_custom_call.1} parent=11 // pred_fallthru
          _
        // Predicated region
        $region25: #{tpu_custom_call.1} parent=11 // pred_check
          %p317 = pneg %p215
        $region26: #{tpu_custom_call.1} parent=11 // pred_check_branch
          %319 = sbr.rel (%p317) target = $region28
        $region27: #{tpu_custom_call.1} parent=11 // pred_region
          _
        $region28: #{tpu_custom_call.1} parent=11 // pred_fallthru
          _
      $region12: #{tpu_custom_call.1} parent=5 // pred_fallthru
        _
      %p320 = scmp.lt.s32.totalorder %s28, 2
      // Predicated region
      $region29: #{tpu_custom_call.1} parent=5 // pred_check
        %p321 = pneg %p320
      $region30: #{tpu_custom_call.1} parent=5 // pred_check_branch
        %323 = sbr.rel (%p321) target = $region32
      $region31: #{tpu_custom_call.1} parent=5 // pred_region
        // Predicated region
        $region33: #{tpu_custom_call.1} parent=31 // pred_check
          %p324 = pneg %p69
        $region34: #{tpu_custom_call.1} parent=31 // pred_check_branch
          %326 = sbr.rel (%p324) target = $region36
        $region35: #{tpu_custom_call.1} parent=31 // pred_region
          %s327 = sand.u32 %s59, 1
          %s328 = scalar_lea.sflag [#allocation7], %s327
          %s329 = sand.u32 %s59, 1
          %s330 = smul.addr %s329, 4
          %s331 = scalar_lea.vmem [#allocation6], %s330
          %333 = vsyncadd %s328, 0
          %s334 = sadd.s32 %s36, %s35
          %s335 = smul.addr %s334, 4
          %s336 = scalar_lea.hbm %s0, %s335
          %s338 = sshll.u32 %s336, 4
          %s339 = int_to_ptr.hbm [resolvable:$true] %s338
          %s340 = sshll.u32 %s331, 4
          %s341 = int_to_ptr.vmem [resolvable:$true] %s340
          %343 = dma.hbm_to_vmem [thread:$0]  %s339, 64, %s341, %s328
        $region36: #{tpu_custom_call.1} parent=31 // pred_fallthru
          _
        // Predicated region
        $region37: #{tpu_custom_call.1} parent=31 // pred_check
          %p344 = pneg %p97
        $region38: #{tpu_custom_call.1} parent=31 // pred_check_branch
          %346 = sbr.rel (%p344) target = $region40
        $region39: #{tpu_custom_call.1} parent=31 // pred_region
          %s347 = sand.u32 %s28, 1
          %s348 = scalar_lea.sflag [#allocation10], %s347
          %s349 = sand.u32 %s87, 1
          %s350 = smul.addr %s349, 4
          %s351 = scalar_lea.vmem [#allocation9], %s350
          %353 = vsyncadd %s348, 0
          %s354 = sadd.s32 %s37, %s35
          %s355 = smul.addr %s354, 4
          %s356 = scalar_lea.hbm %s1, %s355
          %s358 = sshll.u32 %s356, 4
          %s359 = int_to_ptr.hbm [resolvable:$true] %s358
          %s360 = sshll.u32 %s351, 4
          %s361 = int_to_ptr.vmem [resolvable:$true] %s360
          %363 = dma.hbm_to_vmem [thread:$0]  %s359, 64, %s361, %s348
        $region40: #{tpu_custom_call.1} parent=31 // pred_fallthru
          _
        // Predicated region
        $region41: #{tpu_custom_call.1} parent=31 // pred_check
          %p364 = pneg %p125
        $region42: #{tpu_custom_call.1} parent=31 // pred_check_branch
          %366 = sbr.rel (%p364) target = $region44
        $region43: #{tpu_custom_call.1} parent=31 // pred_region
          %s367 = sand.u32 %s28, 1
          %s368 = scalar_lea.sflag [#allocation10], %s367
          %s369 = sand.u32 %s115, 1
          %s370 = smul.addr %s369, 4
          %s371 = scalar_lea.vmem [#allocation11], %s370
          %373 = vsyncadd %s368, 0
          %s374 = sadd.s32 %s37, %s35
          %s375 = smul.addr %s374, 4
          %s376 = scalar_lea.hbm %s2, %s375
          %s378 = sshll.u32 %s376, 4
          %s379 = int_to_ptr.hbm [resolvable:$true] %s378
          %s380 = sshll.u32 %s371, 4
          %s381 = int_to_ptr.vmem [resolvable:$true] %s380
          %383 = dma.hbm_to_vmem [thread:$0]  %s379, 64, %s381, %s368
        $region44: #{tpu_custom_call.1} parent=31 // pred_fallthru
          _
      $region32: #{tpu_custom_call.1} parent=5 // pred_fallthru
        _
      %p384 = scmp.le.s32.totalorder 1, %s28
      %p385 = scmp.lt.s32.totalorder %s28, 3
      %p386 = pnand %p384, %p385
      %p387 = pneg %p386
      // Predicated region
      $region45: #{tpu_custom_call.1} parent=5 // pred_check
        _
      $region46: #{tpu_custom_call.1} parent=5 // pred_check_branch
        %389 = sbr.rel (%p386) target = $region48
      $region47: #{tpu_custom_call.1} parent=5 // pred_region
        %s390 = ssub.s32 %s28, 1
        %s391 = sand.u32 %s62, 1
        %s392 = scalar_lea.sflag [#allocation7], %s391
        %s393 = sand.u32 %s62, 1
        %s394 = smul.addr %s393, 4
        %s395 = scalar_lea.vmem [#allocation6], %s394
        // Predicated region
        $region49: #{tpu_custom_call.1} parent=47 // pred_check
          %p396 = pneg %p75
        $region50: #{tpu_custom_call.1} parent=47 // pred_check_branch
          %398 = sbr.rel (%p396) target = $region52
        $region51: #{tpu_custom_call.1} parent=47 // pred_region
          %400 = dma.done %s392, 64
        $region52: #{tpu_custom_call.1} parent=47 // pred_fallthru
          _
        %s401 = sand.u32 %s33, 1
        %s402 = scalar_lea.sflag [#allocation10], %s401
        %s403 = sand.u32 %s90, 1
        %s404 = smul.addr %s403, 4
        %s405 = scalar_lea.vmem [#allocation9], %s404
        // Predicated region
        $region53: #{tpu_custom_call.1} parent=47 // pred_check
          %p406 = pneg %p103
        $region54: #{tpu_custom_call.1} parent=47 // pred_check_branch
          %408 = sbr.rel (%p406) target = $region56
        $region55: #{tpu_custom_call.1} parent=47 // pred_region
          %410 = dma.done %s402, 64
        $region56: #{tpu_custom_call.1} parent=47 // pred_fallthru
          _
        %s411 = sand.u32 %s33, 1
        %s412 = scalar_lea.sflag [#allocation10], %s411
        %s413 = sand.u32 %s118, 1
        %s414 = smul.addr %s413, 4
        %s415 = scalar_lea.vmem [#allocation11], %s414
        // Predicated region
        $region57: #{tpu_custom_call.1} parent=47 // pred_check
          %p416 = pneg %p131
        $region58: #{tpu_custom_call.1} parent=47 // pred_check_branch
          %418 = sbr.rel (%p416) target = $region60
        $region59: #{tpu_custom_call.1} parent=47 // pred_region
          %420 = dma.done %s412, 64
        $region60: #{tpu_custom_call.1} parent=47 // pred_fallthru
          _
        // Predicated region
        $region61: #{tpu_custom_call.1} parent=47 // pred_check
          %p421 = pneg %p152
        $region62: #{tpu_custom_call.1} parent=47 // pred_check_branch
          %423 = sbr.rel (%p421) target = $region64
        $region63: #{tpu_custom_call.1} parent=47 // pred_region
          %425 = dma.done [#allocation13], 256
        $region64: #{tpu_custom_call.1} parent=47 // pred_fallthru
          _
        // Predicated region
        $region65: #{tpu_custom_call.1} parent=47 // pred_check
          %p426 = pneg %p194
        $region66: #{tpu_custom_call.1} parent=47 // pred_check_branch
          %428 = sbr.rel (%p426) target = $region68
        $region67: #{tpu_custom_call.1} parent=47 // pred_region
          %430 = dma.done [#allocation13], 256
        $region68: #{tpu_custom_call.1} parent=47 // pred_fallthru
          _
        %s431 = sand.u32 %s62, 1
        %s432 = scalar_lea.sflag [#allocation7], %s431
        %s433 = sand.u32 %s62, 1
        %s434 = smul.addr %s433, 4
        %s435 = scalar_lea.vmem [#allocation6], %s434
        %p436 = pneg %p75
        %p437 = pneg %p72
        %s438 = sand.u32 %s33, 1
        %s439 = scalar_lea.sflag [#allocation10], %s438
        %s440 = sand.u32 %s90, 1
        %s441 = smul.addr %s440, 4
        %s442 = scalar_lea.vmem [#allocation9], %s441
        %p443 = pneg %p103
        %p444 = pneg %p100
        %s445 = sand.u32 %s33, 1
        %s446 = scalar_lea.sflag [#allocation10], %s445
        %s447 = sand.u32 %s118, 1
        %s448 = smul.addr %s447, 4
        %s449 = scalar_lea.vmem [#allocation11], %s448
        %p450 = pneg %p131
        %p451 = pneg %p128
        %p452 = pneg %p152
        %p453 = pneg %p149
        %p454 = pneg %p173
        %p455 = pneg %p170
        %p456 = pneg %p194
        %p457 = pneg %p191
        %p458 = pneg %p215
        %p459 = pneg %p212
        %p460 = pneg %p243
        %p461 = pneg %p240
        %s462 = sand.u32 %s230, 1
        %s463 = scalar_lea.sflag [#allocation8], %s462
        %s464 = sand.u32 %s230, 1
        %s465 = smul.addr %s464, 8
        %s466 = scalar_lea.vmem [#allocation15], %s465
        %p467 = pneg %p271
        %p468 = pneg %p268
        %s469 = sand.u32 %s258, 1
        %s470 = scalar_lea.sflag [#allocation17], %s469
        %s471 = sand.u32 %s258, 1
        %s472 = smul.addr %s471, 16
        %s473 = scalar_lea.vmem [#allocation16], %s472
        %p475 = scmp.eq.s32.totalorder %s40, 0
        // Predicated region
        $region69: #{tpu_custom_call.1} parent=47 // pred_check
          %p476 = pneg %p475
        $region70: #{tpu_custom_call.1} parent=47 // pred_check_branch
          %478 = sbr.rel (%p476) target = $region72
        $region71: #{tpu_custom_call.1} parent=47 // pred_region
          %v479 = vld [vmem:[%s395] sm:$0xf]
          %v480 = vld [vmem:[#allocation12] sm:$0xf]
          %v481 = vld [vmem:[#allocation12 + $0x4] sm:$0xf]
          %v482 = vld [vmem:[#allocation12 + $0x8] sm:$0xf]
          %v483 = vld [vmem:[#allocation12 + $0xc] sm:$0xf]
          %v484 = vld [vmem:[%s4] sm:$0x1]
          %v486 = vperm.slane %v484, 0
          %v492 = vunpack.c.l.b16 %v480
          %v493 = vunpack.c.l.b16 %v481
          %v494 = vunpack.c.l.b16 %v482
          %v495 = vunpack.c.l.b16 %v483
          %v496 = vpack.c.b16 %v493, %v492
          %v497 = vpack.c.b16 %v495, %v494
          %vm500 = vcmask 261120
          %v502 = vsel %vm500, %v479, 0
          %504 = vmatpush.bf16.msra.mxu0 0
          %505 = vmatpush.bf16.msra.mxu0 0
          %506 = vmatpush.bf16.msra.mxu0 0
          %507 = vmatpush.bf16.msra.mxu0 0
          %508 = vmatpush.bf16.msra.mxu0 0
          %509 = vmatpush.bf16.msra.mxu0 0
          %510 = vmatpush.bf16.msra.mxu0 %v497
          %511 = vmatpush.bf16.msra.mxu0 %v496
          %512 = vmatmul.bf16.gmra.mxu0 %v502
          %v513 = vpop.f32.mrf.mxu0
          %v514 = vadd.f32 %v486, %v513
          %v515 = vpop.f32.mrf.mxu0
          %516 = vdwg.mxu0
          %v517 = vpack.c.bf16 %v514, %v514
          %vm518 = vcmask 60416
          %519 = vst.msk [vmem:[#allocation2] sm:$0xf] %vm518, %v517
          %521 = vrot.lane.b32.xlu0 %v517, 120
          %v522 = vpop.permute.xlu0 %521
          %524 = vst.msk [vmem:[#allocation2 + $0x4] sm:$0xf] %vm518, %v522
          %525 = vrot.lane.b32.xlu0 %v517, 112
          %v526 = vpop.permute.xlu0 %525
          %528 = vst.msk [vmem:[#allocation2 + $0x8] sm:$0xf] %vm518, %v526
          %529 = vrot.lane.b32.xlu0 %v517, 104
          %v530 = vpop.permute.xlu0 %529
          %532 = vst.msk [vmem:[#allocation2 + $0xc] sm:$0xf] %vm518, %v530
          %vm533 = vcmask 7168
          %534 = vst.msk [vmem:[#allocation3] sm:$0xff] %vm533, -inf
          %535 = vst.msk [vmem:[#allocation3 + $0x8] sm:$0xff] %vm533, -inf
          %536 = vst.msk [vmem:[#allocation3 + $0x10] sm:$0xff] %vm533, -inf
          %537 = vst.msk [vmem:[#allocation3 + $0x18] sm:$0xff] %vm533, -inf
          %538 = vst.msk [vmem:[#allocation4] sm:$0xff] %vm533, 0.0
          %539 = vst.msk [vmem:[#allocation4 + $0x8] sm:$0xff] %vm533, 0.0
          %540 = vst.msk [vmem:[#allocation4 + $0x10] sm:$0xff] %vm533, 0.0
          %541 = vst.msk [vmem:[#allocation4 + $0x18] sm:$0xff] %vm533, 0.0
          %vm542 = vcmask 64512
          %543 = vst.msk [vmem:[#allocation5] sm:$0xff] %vm542, 0.0
          %544 = vst.msk [vmem:[#allocation5 + $0x8] sm:$0xff] %vm542, 0.0
          %545 = vst.msk [vmem:[#allocation5 + $0x10] sm:$0xff] %vm542, 0.0
          %546 = vst.msk [vmem:[#allocation5 + $0x18] sm:$0xff] %vm542, 0.0
        $region72: #{tpu_custom_call.1} parent=47 // pred_fallthru
          _
        %v547 = vld [vmem:[#allocation2] sm:$0xf]
        %v548 = vld [vmem:[#allocation2 + $0x4] sm:$0xf]
        %v549 = vld [vmem:[#allocation2 + $0x8] sm:$0xf]
        %v550 = vld [vmem:[#allocation2 + $0xc] sm:$0xf]
        %v551 = vld [vmem:[%s405] sm:$0xf]
        %v556 = vunpack.c.l.b16 %v547
        %v557 = vunpack.c.l.b16 %v548
        %v558 = vunpack.c.l.b16 %v549
        %v559 = vunpack.c.l.b16 %v550
        %v560 = vpack.c.b16 %v557, %v556
        %v561 = vpack.c.b16 %v559, %v558
        %vm562 = vcmask 64512
        %v564 = vsel %vm562, %v560, 0
        %v567 = vsel %vm562, %v561, 0
        %v570 = vsel %vm562, %v551, 0
        %572 = vmatpush.bf16.xpose.msra.mxu0 0
        %573 = vmatpush.bf16.xpose.msra.mxu0 0
        %574 = vmatpush.bf16.xpose.msra.mxu0 0
        %575 = vmatpush.bf16.xpose.msra.mxu0 0
        %576 = vmatpush.bf16.xpose.msra.mxu0 0
        %577 = vmatpush.bf16.xpose.msra.mxu0 0
        %578 = vmatpush.bf16.xpose.msra.mxu0 0
        %579 = vmatpush.bf16.xpose.msra.mxu0 %v570
        %580 = vmatmul.bf16.gmra.mxu0 %v564
        %v581 = vpop.f32.mrf.mxu0
        %v582 = vadd.f32 0.0, %v581
        %v583 = vpop.f32.mrf.mxu0
        %v584 = vadd.f32 0.0, %v583
        %585 = vmatmul.bf16.gmra.mxu0 %v567
        %v586 = vpop.f32.mrf.mxu0
        %v587 = vadd.f32 0.0, %v586
        %v588 = vpop.f32.mrf.mxu0
        %v589 = vadd.f32 0.0, %v588
        %590 = vdwg.mxu0
        %v591 = vld [vmem:[#allocation3] sm:$0xff]
        %v592 = vld [vmem:[#allocation3 + $0x8] sm:$0xff]
        %v593 = vld [vmem:[#allocation3 + $0x10] sm:$0xff]
        %v594 = vld [vmem:[#allocation3 + $0x18] sm:$0xff]
        %v595 = vsel %vm562, %v582, -inf
        %596 = vmax.xlane.f32.xlu0 %v595
        %v597 = vpop.xlane.xlu0 %596
        %v598 = vsel %vm562, %v584, -inf
        %599 = vmax.xlane.f32.xlu0 %v598
        %v600 = vpop.xlane.xlu0 %599
        %v601 = vsel %vm562, %v587, -inf
        %602 = vmax.xlane.f32.xlu0 %v601
        %v603 = vpop.xlane.xlu0 %602
        %v604 = vsel %vm562, %v589, -inf
        %605 = vmax.xlane.f32.xlu0 %v604
        %v606 = vpop.xlane.xlu0 %605
        %v607 = vmax.f32 %v591, %v597
        %v608 = vmax.f32 %v592, %v600
        %v609 = vmax.f32 %v593, %v603
        %v610 = vmax.f32 %v594, %v606
        %v611 = vsub.f32 %v591, %v607
        %v612 = vsub.f32 %v592, %v608
        %v613 = vsub.f32 %v593, %v609
        %v614 = vsub.f32 %v594, %v610
        %v615 = vmul.f32 %v611, 1.442695
        %v616 = vpow.pop %v615
        %v617 = vmul.f32 %v612, 1.442695
        %v618 = vpow.pop %v617
        %v619 = vmul.f32 %v613, 1.442695
        %v620 = vpow.pop %v619
        %v621 = vmul.f32 %v614, 1.442695
        %v622 = vpow.pop %v621
        %624 = vset.pattern.permute.xlu0 0
        %625 = vperm.xlu0 %624, %v607
        %v626 = vpop.permute.xlu0 %625
        %629 = vset.pattern.permute.xlu0 0
        %630 = vperm.xlu0 %629, %v608
        %v631 = vpop.permute.xlu0 %630
        %634 = vset.pattern.permute.xlu0 0
        %635 = vperm.xlu0 %634, %v609
        %v636 = vpop.permute.xlu0 %635
        %639 = vset.pattern.permute.xlu0 0
        %640 = vperm.xlu0 %639, %v610
        %v641 = vpop.permute.xlu0 %640
        %v643 = vsub.f32 %v582, %v626
        %v644 = vsub.f32 %v584, %v631
        %v645 = vsub.f32 %v587, %v636
        %v646 = vsub.f32 %v589, %v641
        %v647 = vmul.f32 %v643, 1.442695
        %v648 = vpow.pop %v647
        %v649 = vmul.f32 %v644, 1.442695
        %v650 = vpow.pop %v649
        %v651 = vmul.f32 %v645, 1.442695
        %v652 = vpow.pop %v651
        %v653 = vmul.f32 %v646, 1.442695
        %v654 = vpow.pop %v653
        %v655 = vld [vmem:[#allocation4] sm:$0xff]
        %v656 = vld [vmem:[#allocation4 + $0x8] sm:$0xff]
        %v657 = vld [vmem:[#allocation4 + $0x10] sm:$0xff]
        %v658 = vld [vmem:[#allocation4 + $0x18] sm:$0xff]
        %v659 = vmul.f32 %v616, %v655
        %v660 = vmul.f32 %v618, %v656
        %v661 = vmul.f32 %v620, %v657
        %v662 = vmul.f32 %v622, %v658
        %v663 = vsel %vm562, %v648, 0.0
        %664 = vadd.xlane.f32.xlu0 %v663
        %v665 = vpop.xlane.xlu0 %664
        %v666 = vsel %vm562, %v650, 0.0
        %667 = vadd.xlane.f32.xlu0 %v666
        %v668 = vpop.xlane.xlu0 %667
        %v669 = vsel %vm562, %v652, 0.0
        %670 = vadd.xlane.f32.xlu0 %v669
        %v671 = vpop.xlane.xlu0 %670
        %v672 = vsel %vm562, %v654, 0.0
        %673 = vadd.xlane.f32.xlu0 %v672
        %v674 = vpop.xlane.xlu0 %673
        %v675 = vadd.f32 %v659, %v665
        %v676 = vadd.f32 %v660, %v668
        %v677 = vadd.f32 %v661, %v671
        %v678 = vadd.f32 %v662, %v674
        %vm679 = vcmask 7168
        %680 = vst.msk [vmem:[#allocation4] sm:$0xff] %vm679, %v675
        %681 = vst.msk [vmem:[#allocation4 + $0x8] sm:$0xff] %vm679, %v676
        %682 = vst.msk [vmem:[#allocation4 + $0x10] sm:$0xff] %vm679, %v677
        %683 = vst.msk [vmem:[#allocation4 + $0x18] sm:$0xff] %vm679, %v678
        %v684 = vpack.c.bf16 %v650, %v648
        %v685 = vpack.c.bf16 %v654, %v652
        %v686 = vld [vmem:[%s415] sm:$0xf]
        %v688 = vsel %vm562, %v684, 0
        %v691 = vsel %vm562, %v685, 0
        %vm693 = vcmask 1043456
        %v695 = vsel %vm693, %v686, 0
        %697 = vmatpush.bf16.msra.mxu0 0
        %698 = vmatpush.bf16.msra.mxu0 0
        %699 = vmatpush.bf16.msra.mxu0 0
        %700 = vmatpush.bf16.msra.mxu0 0
        %701 = vmatpush.bf16.msra.mxu0 0
        %702 = vmatpush.bf16.msra.mxu0 0
        %703 = vmatpush.bf16.msra.mxu0 0
        %704 = vmatpush.bf16.msra.mxu0 %v695
        %705 = vmatmul.bf16.gmra.mxu0 %v688
        %v706 = vpop.f32.mrf.mxu0
        %v707 = vadd.f32 0.0, %v706
        %v708 = vpop.f32.mrf.mxu0
        %v709 = vadd.f32 0.0, %v708
        %710 = vmatmul.bf16.gmra.mxu0 %v691
        %v711 = vpop.f32.mrf.mxu0
        %v712 = vadd.f32 0.0, %v711
        %v713 = vpop.f32.mrf.mxu0
        %v714 = vadd.f32 0.0, %v713
        %715 = vdwg.mxu0
        %v716 = vld [vmem:[#allocation5] sm:$0xff]
        %v717 = vld [vmem:[#allocation5 + $0x8] sm:$0xff]
        %v718 = vld [vmem:[#allocation5 + $0x10] sm:$0xff]
        %v719 = vld [vmem:[#allocation5 + $0x18] sm:$0xff]
        %721 = vset.pattern.permute.xlu0 0
        %722 = vperm.xlu0 %721, %v616
        %v723 = vpop.permute.xlu0 %722
        %726 = vset.pattern.permute.xlu0 0
        %727 = vperm.xlu0 %726, %v618
        %v728 = vpop.permute.xlu0 %727
        %731 = vset.pattern.permute.xlu0 0
        %732 = vperm.xlu0 %731, %v620
        %v733 = vpop.permute.xlu0 %732
        %736 = vset.pattern.permute.xlu0 0
        %737 = vperm.xlu0 %736, %v622
        %v738 = vpop.permute.xlu0 %737
        %v740 = vmul.f32 %v723, %v716
        %v741 = vmul.f32 %v728, %v717
        %v742 = vmul.f32 %v733, %v718
        %v743 = vmul.f32 %v738, %v719
        %v744 = vadd.f32 %v740, %v707
        %v745 = vadd.f32 %v741, %v709
        %v746 = vadd.f32 %v742, %v712
        %v747 = vadd.f32 %v743, %v714
        %748 = vst.msk [vmem:[#allocation5] sm:$0xff] %vm562, %v744
        %749 = vst.msk [vmem:[#allocation5 + $0x8] sm:$0xff] %vm562, %v745
        %750 = vst.msk [vmem:[#allocation5 + $0x10] sm:$0xff] %vm562, %v746
        %751 = vst.msk [vmem:[#allocation5 + $0x18] sm:$0xff] %vm562, %v747
        %752 = vst.msk [vmem:[#allocation3] sm:$0xff] %vm679, %v607
        %753 = vst.msk [vmem:[#allocation3 + $0x8] sm:$0xff] %vm679, %v608
        %754 = vst.msk [vmem:[#allocation3 + $0x10] sm:$0xff] %vm679, %v609
        %755 = vst.msk [vmem:[#allocation3 + $0x18] sm:$0xff] %vm679, %v610
        // Predicated region
        $region73: #{tpu_custom_call.1} parent=47 // pred_check
          %p756 = pneg %p475
        $region74: #{tpu_custom_call.1} parent=47 // pred_check_branch
          %758 = sbr.rel (%p756) target = $region76
        $region75: #{tpu_custom_call.1} parent=47 // pred_region
          %v759 = vld [vmem:[#allocation4] sm:$0xff]
          %v760 = vld [vmem:[#allocation4 + $0x8] sm:$0xff]
          %v761 = vld [vmem:[#allocation4 + $0x10] sm:$0xff]
          %v762 = vld [vmem:[#allocation4 + $0x18] sm:$0xff]
          %v763 = vrcp.pop %v759
          %v764 = vrcp.pop %v760
          %v765 = vrcp.pop %v761
          %v766 = vrcp.pop %v762
          %v767 = vld [vmem:[#allocation5] sm:$0xff]
          %769 = vset.pattern.permute.xlu0 0
          %770 = vperm.xlu0 %769, %v763
          %v771 = vpop.permute.xlu0 %770
          %v773 = vmul.f32 %v767, %v771
          %v774 = vpack.c.bf16 %v773, %v773
          %s775 = scalar_lea.vmem [#allocation5], 8
          %v776 = vld [vmem:[%s775] sm:$0xff]
          %778 = vset.pattern.permute.xlu0 0
          %779 = vperm.xlu0 %778, %v764
          %v780 = vpop.permute.xlu0 %779
          %v782 = vmul.f32 %v776, %v780
          %v783 = vpack.c.bf16 %v782, %v782
          %s784 = scalar_lea.vmem [#allocation5], 16
          %v785 = vld [vmem:[%s784] sm:$0xff]
          %787 = vset.pattern.permute.xlu0 0
          %788 = vperm.xlu0 %787, %v765
          %v789 = vpop.permute.xlu0 %788
          %v791 = vmul.f32 %v785, %v789
          %v792 = vpack.c.bf16 %v791, %v791
          %s793 = scalar_lea.vmem [#allocation5], 24
          %v794 = vld [vmem:[%s793] sm:$0xff]
          %796 = vset.pattern.permute.xlu0 0
          %797 = vperm.xlu0 %796, %v766
          %v798 = vpop.permute.xlu0 %797
          %v800 = vmul.f32 %v794, %v798
          %v801 = vpack.c.bf16 %v800, %v800
          %v803 = vunpack.c.l.b16 %v783
          %v804 = vpack.c.b16 %v803, %v803
          %805 = vrot.lane.b32.xlu0 %v804, 8
          %v806 = vpop.permute.xlu0 %805
          %v808 = vunpack.c.l.b16 %v792
          %v809 = vpack.c.b16 %v808, %v808
          %810 = vrot.lane.b32.xlu0 %v809, 16
          %v811 = vpop.permute.xlu0 %810
          %v813 = vunpack.c.l.b16 %v801
          %v814 = vpack.c.b16 %v813, %v813
          %815 = vrot.lane.b32.xlu0 %v814, 24
          %v816 = vpop.permute.xlu0 %815
          %v819 = vsel %vm562, %v774, %v806
          %vm820 = vcmask 130048
          %v822 = vsel %vm820, %v819, %v811
          %vm823 = vcmask 195584
          %v825 = vsel %vm823, %v822, %v816
          %v826 = vld [vmem:[#allocation14] sm:$0xf]
          %v827 = vld [vmem:[#allocation14 + $0x4] sm:$0xf]
          %v828 = vld [vmem:[#allocation14 + $0x8] sm:$0xf]
          %v829 = vld [vmem:[#allocation14 + $0xc] sm:$0xf]
          %v830 = vld [vmem:[%s6] sm:$0x1]
          %v832 = vperm.slane %v830, 0
          %v838 = vunpack.c.l.b16 %v826
          %v839 = vunpack.c.l.b16 %v827
          %v840 = vunpack.c.l.b16 %v828
          %v841 = vunpack.c.l.b16 %v829
          %v842 = vpack.c.b16 %v839, %v838
          %v843 = vpack.c.b16 %v841, %v840
          %vm846 = vcmask 261120
          %v847 = vsel %vm846, %v825, 0
          %849 = vmatpush.bf16.msra.mxu0 0
          %850 = vmatpush.bf16.msra.mxu0 0
          %851 = vmatpush.bf16.msra.mxu0 0
          %852 = vmatpush.bf16.msra.mxu0 0
          %853 = vmatpush.bf16.msra.mxu0 0
          %854 = vmatpush.bf16.msra.mxu0 0
          %855 = vmatpush.bf16.msra.mxu0 %v843
          %856 = vmatpush.bf16.msra.mxu0 %v842
          %857 = vmatmul.bf16.gmra.mxu0 %v847
          %v858 = vpop.f32.mrf.mxu0
          %v859 = vadd.f32 %v832, %v858
          %v860 = vpop.f32.mrf.mxu0
          %861 = vdwg.mxu0
          %862 = vst.msk [vmem:[%s466] sm:$0xff] %vm846, %v859
          %v863 = vmul.f32 %v648, %v771
          %v864 = vmul.f32 %v650, %v780
          %v865 = vmul.f32 %v652, %v789
          %v866 = vmul.f32 %v654, %v798
          %v867 = vpack.c.bf16 %v863, %v863
          %v868 = vpack.c.bf16 %v864, %v864
          %v869 = vpack.c.bf16 %v865, %v865
          %v870 = vpack.c.bf16 %v866, %v866
          %vm871 = vcmask 60416
          %872 = vst.msk [vmem:[%s473] sm:$0xf] %vm871, %v867
          %873 = vst.msk [vmem:[%s473 + $0x4] sm:$0xf] %vm871, %v868
          %874 = vst.msk [vmem:[%s473 + $0x8] sm:$0xf] %vm871, %v869
          %875 = vst.msk [vmem:[%s473 + $0xc] sm:$0xf] %vm871, %v870
        $region76: #{tpu_custom_call.1} parent=47 // pred_fallthru
          _
        %s876 = sand.u32 %s230, 1
        %s877 = scalar_lea.sflag [#allocation8], %s876
        %s878 = sand.u32 %s230, 1
        %s879 = smul.addr %s878, 8
        %s880 = scalar_lea.vmem [#allocation15], %s879
        %s881 = sand.u32 %s258, 1
        %s882 = scalar_lea.sflag [#allocation17], %s881
        %s883 = sand.u32 %s258, 1
        %s884 = smul.addr %s883, 16
        %s885 = scalar_lea.vmem [#allocation16], %s884
        // Predicated region
        $region77: #{tpu_custom_call.1} parent=47 // pred_check
          %p886 = pneg %p240
        $region78: #{tpu_custom_call.1} parent=47 // pred_check_branch
          %888 = sbr.rel (%p886) target = $region80
        $region79: #{tpu_custom_call.1} parent=47 // pred_region
          %890 = vsyncadd %s877, 0
          %s891 = sadd.s32 %s39, %s38
          %s892 = smul.addr %s891, 8
          %s893 = scalar_lea.hbm %s7, %s892
          %s895 = sshll.u32 %s880, 4
          %s896 = int_to_ptr.vmem [resolvable:$true] %s895
          %s897 = sshll.u32 %s893, 4
          %s898 = int_to_ptr.hbm [resolvable:$true] %s897
          %900 = dma.vmem_to_hbm [thread:$0]  %s896, 128, %s898, %s877
        $region80: #{tpu_custom_call.1} parent=47 // pred_fallthru
          _
        // Predicated region
        $region81: #{tpu_custom_call.1} parent=47 // pred_check
          %p901 = pneg %p268
        $region82: #{tpu_custom_call.1} parent=47 // pred_check_branch
          %903 = sbr.rel (%p901) target = $region84
        $region83: #{tpu_custom_call.1} parent=47 // pred_region
          %905 = vsyncadd %s882, 0
          %s906 = smul.addr %s38, 4
          %s907 = sadd.s32 %s39, %s906
          %s908 = smul.addr %s907, 4
          %s909 = scalar_lea.hbm %s8, %s908
          %s910 = sshll.u32 %s885, 4
          %s911 = int_to_ptr.vmem [resolvable:$true] %s910
          %s912 = sshll.u32 %s909, 4
          %s913 = int_to_ptr.hbm [resolvable:$true] %s912
          %918 = dma.vmem_to_hbm [thread:$0]  %s911, 256, %s913, %s882, 64, 64, 4
        $region84: #{tpu_custom_call.1} parent=47 // pred_fallthru
          _
      $region48: #{tpu_custom_call.1} parent=5 // pred_fallthru
        _
      %p919 = scmp.le.s32.totalorder 2, %s28
      // Predicated region
      $region85: #{tpu_custom_call.1} parent=5 // pred_check
        %p920 = pneg %p919
      $region86: #{tpu_custom_call.1} parent=5 // pred_check_branch
        %922 = sbr.rel (%p920) target = $region88
      $region87: #{tpu_custom_call.1} parent=5 // pred_region
        %s923 = ssub.s32 %s28, 2
        // Predicated region
        $region89: #{tpu_custom_call.1} parent=87 // pred_check
          %p924 = pneg %p246
        $region90: #{tpu_custom_call.1} parent=87 // pred_check_branch
          %926 = sbr.rel (%p924) target = $region92
        $region91: #{tpu_custom_call.1} parent=87 // pred_region
          %s927 = sand.u32 %s231, 1
          %s928 = scalar_lea.sflag [#allocation8], %s927
          %s929 = sand.u32 %s231, 1
          %s930 = smul.addr %s929, 8
          %s931 = scalar_lea.vmem [#allocation15], %s930
          %933 = dma.done %s928, 128
        $region92: #{tpu_custom_call.1} parent=87 // pred_fallthru
          _
        // Predicated region
        $region93: #{tpu_custom_call.1} parent=87 // pred_check
          %p934 = pneg %p274
        $region94: #{tpu_custom_call.1} parent=87 // pred_check_branch
          %936 = sbr.rel (%p934) target = $region96
        $region95: #{tpu_custom_call.1} parent=87 // pred_region
          %s937 = sand.u32 %s259, 1
          %s938 = scalar_lea.sflag [#allocation17], %s937
          %s939 = sand.u32 %s259, 1
          %s940 = smul.addr %s939, 16
          %s941 = scalar_lea.vmem [#allocation16], %s940
          %943 = dma.done %s938, 256
        $region96: #{tpu_custom_call.1} parent=87 // pred_fallthru
          _
      $region88: #{tpu_custom_call.1} parent=5 // pred_fallthru
        _
    $region6: #{tpu_custom_call.1} parent=1 // loop_footer
      %s32 = sadd.s32 1, %s28
    $region7: #{tpu_custom_call.1} parent=1 // loop_footer_branch
      %27 = sbr.rel target = $region3
    $region8: #{tpu_custom_call.1} parent=1 // loop_exit
      _
    %944 = vsyncpa [#allocation7], 1
    %s945 = scalar_lea.sflag [#allocation7], 1
    %946 = vsyncpa %s945, 1
    %947 = vsyncpa [#allocation10], 1
    %s948 = scalar_lea.sflag [#allocation10], 1
    %949 = vsyncpa %s948, 1
    %950 = vsyncpa [#allocation13], 1
    %951 = vsyncpa [#allocation8], 1
    %s952 = scalar_lea.sflag [#allocation8], 1
    %953 = vsyncpa %s952, 1
    %954 = vsyncpa [#allocation17], 1
    %s955 = scalar_lea.sflag [#allocation17], 1
    %956 = vsyncpa %s955, 1

</llo_original>
